<compile_context>
chip_gen: v7x
topology: tpu7x:2x2x1
jax: 0.10.0
libtpu: 0.0.40
codegen_flags: <defaults>
</compile_context>

<pallas_src>
import jax
import jax.numpy as jnp
from jax.experimental import pallas as pl
from jax.experimental.pallas import tpu as pltpu


def qnetwork_kernel(x_ref, w1_ref, b1_ref, w2_ref, b2_ref, out_ref):
    # fc1 + ReLU (MXU matmul, f32 accumulate; epilogue in f32 on the VPU)
    h = jnp.dot(x_ref[...], w1_ref[...], preferred_element_type=jnp.float32)
    h = jnp.maximum(h + b1_ref[...], 0.0)

    # fc2 + ReLU (output-layer ReLU is part of this module's forward)
    o = jnp.dot(h, w2_ref[...], preferred_element_type=jnp.float32)
    out_ref[...] = jnp.maximum(o + b2_ref[...], 0.0).astype(out_ref.dtype)


def qnetwork_forward(x, w1, b1, w2, b2, *, batch_tile=256):
    """Fused 2-layer MLP forward.

    x:  (batch, in)     float32
    w1: (in, hidden)    float32   (transposed vs PyTorch nn.Linear.weight)
    b1: (hidden,) or (1, hidden)
    w2: (hidden, out)   float32
    b2: (out,) or (1, out)
    Returns (batch, out) float32.
    """
    batch, in_size = x.shape
    hid = w1.shape[1]
    out_size = w2.shape[1]
    b1 = b1.reshape(1, hid)
    b2 = b2.reshape(1, out_size)

    # Batch tile: a single full-extent block for small batches, otherwise a
    # fixed multiple-of-8 tile; the last (partial) block is handled by Pallas
    # edge masking, so no batch padding is needed.
    if batch <= batch_tile:
        tb = batch                     # block == full extent, always legal
    else:
        tb = batch_tile
        assert tb % 8 == 0, "batch_tile must be a multiple of 8"

    grid = (pl.cdiv(batch, tb),)

    return pl.pallas_call(
        qnetwork_kernel,
        out_shape=jax.ShapeDtypeStruct((batch, out_size), jnp.float32),
        grid=grid,
        in_specs=[
            # x: tiled over batch; feature dim is the full (unpadded) extent.
            pl.BlockSpec((tb, in_size), lambda i: (i, 0)),
            # weights/biases: constant index_map -> VMEM-resident across steps
            pl.BlockSpec((in_size, hid), lambda i: (0, 0)),
            pl.BlockSpec((1, hid), lambda i: (0, 0)),
            pl.BlockSpec((hid, out_size), lambda i: (0, 0)),
            pl.BlockSpec((1, out_size), lambda i: (0, 0)),
        ],
        out_specs=pl.BlockSpec((tb, out_size), lambda i: (i, 0)),
        compiler_params=pltpu.CompilerParams(
            # batch tiles are independent -> shard across TCs on v7x
            dimension_semantics=("parallel",),
        ),
    )(x, w1, b1, w2, b2)


def init_params(key, input_size, fc1_unit, output_size):
    """Deterministic synthetic init mimicking nn.Linear's
    uniform(-1/sqrt(fan_in), 1/sqrt(fan_in)). Weights stored as [in, out]."""
    k1, k2, k3, k4 = jax.random.split(key, 4)
    bound1 = 1.0 / jnp.sqrt(input_size)
    bound2 = 1.0 / jnp.sqrt(fc1_unit)
    w1 = jax.random.uniform(k1, (input_size, fc1_unit), jnp.float32, -bound1, bound1)
    b1 = jax.random.uniform(k2, (1, fc1_unit), jnp.float32, -bound1, bound1)
    w2 = jax.random.uniform(k3, (fc1_unit, output_size), jnp.float32, -bound2, bound2)
    b2 = jax.random.uniform(k4, (1, output_size), jnp.float32, -bound2, bound2)
    return w1, b1, w2, b2


if __name__ == "__main__":
    # QNetwork-style shapes: state vector -> fc1 -> actions.  batch=200 with
    # batch_tile=128 exercises both the multi-step grid and the partial
    # (masked) edge block (200 = 128 + 72).
    batch, input_size, fc1_unit, output_size = 200, 32, 64, 8

    key = jax.random.PRNGKey(0)
    kx, kp = jax.random.split(key)
    x = jax.random.normal(kx, (batch, input_size), dtype=jnp.float32)
    w1, b1, w2, b2 = init_params(kp, input_size, fc1_unit, output_size)

    out = qnetwork_forward(x, w1, b1, w2, b2, batch_tile=128)
    out = jax.block_until_ready(out)

    # Reference in plain JAX (same math as the PyTorch forward, including the
    # output-layer ReLU present in this module).
    ref = jnp.maximum(jnp.maximum(x @ w1 + b1, 0.0) @ w2 + b2, 0.0)
    assert out.shape == (batch, output_size)
    assert jnp.allclose(out, ref, atol=1e-5, rtol=1e-5)

    print("KERNEL_OK")
</pallas_src>

<mosaic_0001>
module attributes {stable_mosaic.version = 11 : i64} {
  func.func @qnetwork_kernel(%arg0: i32, %arg1: memref<128x32xf32, #tpu.memory_space<vmem>>, %arg2: memref<32x64xf32, #tpu.memory_space<vmem>>, %arg3: memref<1x64xf32, #tpu.memory_space<vmem>>, %arg4: memref<64x8xf32, #tpu.memory_space<vmem>>, %arg5: memref<1x8xf32, #tpu.memory_space<vmem>>, %arg6: memref<128x8xf32, #tpu.memory_space<vmem>>) attributes {dimension_semantics = [#tpu.dimension_semantics<parallel>], iteration_bounds = array<i64: 2>, scalar_prefetch = 0 : i64, scratch_operands = 0 : i64, tpu.core_type = #tpu.core_type<tc>, window_params = [{transform_indices = @transform_0, window_bounds = array<i64: 128, 32>}, {pipeline_mode = #tpu.pipeline_mode<synchronous>, transform_indices = @transform_1, window_bounds = array<i64: 32, 64>}, {pipeline_mode = #tpu.pipeline_mode<synchronous>, transform_indices = @transform_2, window_bounds = array<i64: 1, 64>}, {pipeline_mode = #tpu.pipeline_mode<synchronous>, transform_indices = @transform_3, window_bounds = array<i64: 64, 8>}, {pipeline_mode = #tpu.pipeline_mode<synchronous>, transform_indices = @transform_4, window_bounds = array<i64: 1, 8>}, {transform_indices = @transform_5, window_bounds = array<i64: 128, 8>}]} {
    %c0 = arith.constant 0 : index
    %c0_0 = arith.constant 0 : index
    %0 = vector.load %arg1[%c0, %c0_0] : memref<128x32xf32, #tpu.memory_space<vmem>>, vector<128x32xf32>
    %c0_1 = arith.constant 0 : index
    %c0_2 = arith.constant 0 : index
    %1 = vector.load %arg2[%c0_1, %c0_2] : memref<32x64xf32, #tpu.memory_space<vmem>>, vector<32x64xf32>
    %cst = arith.constant dense<0.000000e+00> : vector<128x64xf32>
    %2 = tpu.matmul %0, %1, %cst {dimension_numbers = #tpu.dot_dimension_numbers<[1], [0], [0], [1], [0, 0, 1, 1], [], []>} : vector<128x32xf32>, vector<32x64xf32>, vector<128x64xf32> -> vector<128x64xf32>
    %c0_3 = arith.constant 0 : index
    %c0_4 = arith.constant 0 : index
    %3 = vector.load %arg3[%c0_3, %c0_4] : memref<1x64xf32, #tpu.memory_space<vmem>>, vector<1x64xf32>
    %4 = vector.broadcast %3 : vector<1x64xf32> to vector<128x64xf32>
    %5 = arith.addf %2, %4 : vector<128x64xf32>
    %cst_5 = arith.constant 0.000000e+00 : f32
    %6 = vector.broadcast %cst_5 : f32 to vector<128x64xf32>
    %7 = arith.maximumf %5, %6 : vector<128x64xf32>
    %c0_6 = arith.constant 0 : index
    %c0_7 = arith.constant 0 : index
    %8 = vector.load %arg4[%c0_6, %c0_7] : memref<64x8xf32, #tpu.memory_space<vmem>>, vector<64x8xf32>
    %cst_8 = arith.constant dense<0.000000e+00> : vector<128x8xf32>
    %9 = tpu.matmul %7, %8, %cst_8 {dimension_numbers = #tpu.dot_dimension_numbers<[1], [0], [0], [1], [0, 0, 1, 1], [], []>} : vector<128x64xf32>, vector<64x8xf32>, vector<128x8xf32> -> vector<128x8xf32>
    %c0_9 = arith.constant 0 : index
    %c0_10 = arith.constant 0 : index
    %10 = vector.load %arg5[%c0_9, %c0_10] : memref<1x8xf32, #tpu.memory_space<vmem>>, vector<1x8xf32>
    %11 = vector.broadcast %10 : vector<1x8xf32> to vector<128x8xf32>
    %12 = arith.addf %9, %11 : vector<128x8xf32>
    %cst_11 = arith.constant 0.000000e+00 : f32
    %13 = vector.broadcast %cst_11 : f32 to vector<128x8xf32>
    %14 = arith.maximumf %12, %13 : vector<128x8xf32>
    %c0_12 = arith.constant 0 : index
    %c0_13 = arith.constant 0 : index
    %15 = vector.load %arg6[%c0_12, %c0_13] : memref<128x8xf32, #tpu.memory_space<vmem>>, vector<128x8xf32>
    tpu.vector_store %arg6[%c0_12, %c0_13], %14 {strides = array<i32>} : memref<128x8xf32, #tpu.memory_space<vmem>>, vector<128x8xf32>,
    return
  }
  func.func @transform_0(%arg0: i32) -> (i32, i32) {
    %c0_i32 = arith.constant 0 : i32
    %c0_i32_0 = arith.constant 0 : i32
    return %arg0, %c0_i32 : i32, i32
  }
  func.func @transform_1(%arg0: i32) -> (i32, i32) {
    %c0_i32 = arith.constant 0 : i32
    %c0_i32_0 = arith.constant 0 : i32
    %c0_i32_1 = arith.constant 0 : i32
    return %c0_i32, %c0_i32_0 : i32, i32
  }
  func.func @transform_2(%arg0: i32) -> (i32, i32) {
    %c0_i32 = arith.constant 0 : i32
    %c0_i32_0 = arith.constant 0 : i32
    %c0_i32_1 = arith.constant 0 : i32
    return %c0_i32, %c0_i32_0 : i32, i32
  }
  func.func @transform_3(%arg0: i32) -> (i32, i32) {
    %c0_i32 = arith.constant 0 : i32
    %c0_i32_0 = arith.constant 0 : i32
    %c0_i32_1 = arith.constant 0 : i32
    return %c0_i32, %c0_i32_0 : i32, i32
  }
  func.func @transform_4(%arg0: i32) -> (i32, i32) {
    %c0_i32 = arith.constant 0 : i32
    %c0_i32_0 = arith.constant 0 : i32
    %c0_i32_1 = arith.constant 0 : i32
    return %c0_i32, %c0_i32_0 : i32, i32
  }
  func.func @transform_5(%arg0: i32) -> (i32, i32) {
    %c0_i32 = arith.constant 0 : i32
    %c0_i32_0 = arith.constant 0 : i32
    return %arg0, %c0_i32 : i32, i32
  }
}

</mosaic_0001>

<llo_original>
// kernel: tpu_custom_call.1
$region0: #{tpu_custom_call.1}
  #allocation0 [shape = 'u32[]', space=smem, size = 0x4, offset = 0x4, fixed_abs, tag = 'smem constant byte address 0x4 - core index']
  #allocation1 [shape = 'u32[144,128]{1,0:T(1,128)}', space=vmem, size = 0x12000, scoped, tag = 'internal scratch']
  %s0 = inlined_call_operand.vmem [shape: f32[200,32], index: 0, kind: input, shape index: {}]
  %s1 = inlined_call_operand.vmem [shape: f32[32,64], index: 1, kind: input, shape index: {}]
  %s2 = inlined_call_operand.vmem [shape: f32[1,64], index: 2, kind: input, shape index: {}]
  %s3 = inlined_call_operand.vmem [shape: f32[64,8], index: 3, kind: input, shape index: {}]
  %s4 = inlined_call_operand.vmem [shape: f32[1,8], index: 4, kind: input, shape index: {}]
  %s5 = inlined_call_operand.vmem [shape: f32[200,8], index: 5, kind: output, shape index: {}]
  %s6 = sld [smem:[#allocation0]]
  $region101: #{tpu_custom_call.1} parent=0
    _
  %s8 = ssub.s32 1, %s6
  %s9 = scalar_select 0, %s8, %s6
  $region1: #{tpu_custom_call.1} parent=0
    #allocation2 [shape = 'u8[131072]{0}', space=vmem, size = 0x20000, scoped, tag = 'output window, operand 0']
    loop: start=0, step=1, limit=4
    $region2: #{tpu_custom_call.1} parent=1 // loop_pre_header
      _
    $region3: #{tpu_custom_call.1} parent=1 // loop_header
      %s11 = sphi 0, %s15
      %p12 = scmp.ge.s32.totalorder %s11, 4
      %s21 = sphi 0, %s23
      %s24 = sphi 0, %s21
      %s25 = sphi 0, %s24
      %s41 = sphi 0, %s25
      %s45 = sphi 0, %s45
      %s47 = sphi 0, %s45
      %s48 = sphi 0, %s47
      %s62 = sphi 0, %s48
      %s66 = sphi 0, %s66
      %s68 = sphi 0, %s66
      %s69 = sphi 0, %s68
      %s83 = sphi 0, %s69
      %s87 = sphi 0, %s87
      %s89 = sphi 0, %s87
      %s90 = sphi 0, %s89
      %s104 = sphi 0, %s90
      %s108 = sphi 0, %s108
      %s110 = sphi 0, %s108
      %s111 = sphi 0, %s110
      %s125 = sphi 0, %s111
      %s131 = sphi 0, %s133
      %s134 = sphi 0, %s131
      %s135 = sphi 0, %s134
      %s151 = sphi 0, %s135
    $region4: #{tpu_custom_call.1} parent=1 // loop_header_branch
      %14 = sbr.rel (%p12) target = $region8
    $region5: #{tpu_custom_call.1} parent=1 // loop_body
      %s16 = ssub.s32 %s11, 1
      %s17 = ssub.s32 %s11, 2
      %s18 = sadd.s32 %s11, 1
      %s19 = ssub.s32 %s11, %s18
      %p20 = scmp.eq.s32.totalorder %s19, 0
      %s22 = sadd.s32 %s21, 1
      %s23 = scalar_select %p20, %s21, %s22
      %p26 = pneg %p20
      %p27 = scmp.eq.s32.totalorder %s11, 1
      %p28 = por %p26, %p27
      %p29 = scmp.ne.s32.totalorder %s21, %s24
      %p30 = scmp.eq.s32.totalorder %s11, 0
      %p31 = por %p29, %p30
      %p32 = scmp.ne.s32.totalorder %s21, %s24
      %p33 = scmp.eq.s32.totalorder %s16, 1
      %p34 = por %p32, %p33
      %p35 = scmp.ne.s32.totalorder %s24, %s25
      %p36 = scmp.eq.s32.totalorder %s16, 0
      %p37 = por %p35, %p36
      %p38 = scmp.ne.s32.totalorder %s24, %s25
      %p39 = scmp.eq.s32.totalorder %s17, 1
      %p40 = por %p38, %p39
      %p42 = scmp.ne.s32.totalorder %s25, %s41
      %p43 = scmp.eq.s32.totalorder %s17, 0
      %p44 = por %p42, %p43
      %s46 = sadd.s32 %s45, 1
      %p49 = scmp.eq.s32.totalorder %s11, 1
      %p50 = scmp.ne.s32.totalorder %s45, %s47
      %p51 = scmp.eq.s32.totalorder %s11, 0
      %p52 = por %p50, %p51
      %p53 = scmp.ne.s32.totalorder %s45, %s47
      %p54 = scmp.eq.s32.totalorder %s16, 1
      %p55 = por %p53, %p54
      %p56 = scmp.ne.s32.totalorder %s47, %s48
      %p57 = scmp.eq.s32.totalorder %s16, 0
      %p58 = por %p56, %p57
      %p59 = scmp.ne.s32.totalorder %s47, %s48
      %p60 = scmp.eq.s32.totalorder %s17, 1
      %p61 = por %p59, %p60
      %p63 = scmp.ne.s32.totalorder %s48, %s62
      %p64 = scmp.eq.s32.totalorder %s17, 0
      %p65 = por %p63, %p64
      %s67 = sadd.s32 %s66, 1
      %p70 = scmp.eq.s32.totalorder %s11, 1
      %p71 = scmp.ne.s32.totalorder %s66, %s68
      %p72 = scmp.eq.s32.totalorder %s11, 0
      %p73 = por %p71, %p72
      %p74 = scmp.ne.s32.totalorder %s66, %s68
      %p75 = scmp.eq.s32.totalorder %s16, 1
      %p76 = por %p74, %p75
      %p77 = scmp.ne.s32.totalorder %s68, %s69
      %p78 = scmp.eq.s32.totalorder %s16, 0
      %p79 = por %p77, %p78
      %p80 = scmp.ne.s32.totalorder %s68, %s69
      %p81 = scmp.eq.s32.totalorder %s17, 1
      %p82 = por %p80, %p81
      %p84 = scmp.ne.s32.totalorder %s69, %s83
      %p85 = scmp.eq.s32.totalorder %s17, 0
      %p86 = por %p84, %p85
      %s88 = sadd.s32 %s87, 1
      %p91 = scmp.eq.s32.totalorder %s11, 1
      %p92 = scmp.ne.s32.totalorder %s87, %s89
      %p93 = scmp.eq.s32.totalorder %s11, 0
      %p94 = por %p92, %p93
      %p95 = scmp.ne.s32.totalorder %s87, %s89
      %p96 = scmp.eq.s32.totalorder %s16, 1
      %p97 = por %p95, %p96
      %p98 = scmp.ne.s32.totalorder %s89, %s90
      %p99 = scmp.eq.s32.totalorder %s16, 0
      %p100 = por %p98, %p99
      %p101 = scmp.ne.s32.totalorder %s89, %s90
      %p102 = scmp.eq.s32.totalorder %s17, 1
      %p103 = por %p101, %p102
      %p105 = scmp.ne.s32.totalorder %s90, %s104
      %p106 = scmp.eq.s32.totalorder %s17, 0
      %p107 = por %p105, %p106
      %s109 = sadd.s32 %s108, 1
      %p112 = scmp.eq.s32.totalorder %s11, 1
      %p113 = scmp.ne.s32.totalorder %s108, %s110
      %p114 = scmp.eq.s32.totalorder %s11, 0
      %p115 = por %p113, %p114
      %p116 = scmp.ne.s32.totalorder %s108, %s110
      %p117 = scmp.eq.s32.totalorder %s16, 1
      %p118 = por %p116, %p117
      %p119 = scmp.ne.s32.totalorder %s110, %s111
      %p120 = scmp.eq.s32.totalorder %s16, 0
      %p121 = por %p119, %p120
      %p122 = scmp.ne.s32.totalorder %s110, %s111
      %p123 = scmp.eq.s32.totalorder %s17, 1
      %p124 = por %p122, %p123
      %p126 = scmp.ne.s32.totalorder %s111, %s125
      %p127 = scmp.eq.s32.totalorder %s17, 0
      %p128 = por %p126, %p127
      %s129 = ssub.s32 %s11, %s18
      %p130 = scmp.eq.s32.totalorder %s129, 0
      %s132 = sadd.s32 %s131, 1
      %s133 = scalar_select %p130, %s131, %s132
      %p136 = pneg %p130
      %p137 = scmp.eq.s32.totalorder %s11, 1
      %p138 = por %p136, %p137
      %p139 = scmp.ne.s32.totalorder %s131, %s134
      %p140 = scmp.eq.s32.totalorder %s11, 0
      %p141 = por %p139, %p140
      %p142 = scmp.ne.s32.totalorder %s131, %s134
      %p143 = scmp.eq.s32.totalorder %s16, 1
      %p144 = por %p142, %p143
      %p145 = scmp.ne.s32.totalorder %s134, %s135
      %p146 = scmp.eq.s32.totalorder %s16, 0
      %p147 = por %p145, %p146
      %p148 = scmp.ne.s32.totalorder %s134, %s135
      %p149 = scmp.eq.s32.totalorder %s17, 1
      %p150 = por %p148, %p149
      %p152 = scmp.ne.s32.totalorder %s135, %s151
      %p153 = scmp.eq.s32.totalorder %s17, 0
      %p154 = por %p152, %p153
      %p155 = scmp.le.s32.totalorder 1, %s11
      %p156 = scmp.lt.s32.totalorder %s11, 3
      %p157 = pnand %p155, %p156
      %p158 = pneg %p157
      // Predicated region
      $region9: #{tpu_custom_call.1} parent=5 // pred_check
        _
      $region10: #{tpu_custom_call.1} parent=5 // pred_check_branch
        %160 = sbr.rel (%p157) target = $region12
      $region11: #{tpu_custom_call.1} parent=5 // pred_region
        %s161 = ssub.s32 %s11, 1
        // Predicated region
        $region13: #{tpu_custom_call.1} parent=11 // pred_check
          %p162 = pneg %p58
        $region14: #{tpu_custom_call.1} parent=11 // pred_check_branch
          %164 = sbr.rel (%p162) target = $region16
        $region15: #{tpu_custom_call.1} parent=11 // pred_region
          _
        $region16: #{tpu_custom_call.1} parent=11 // pred_fallthru
          _
        // Predicated region
        $region17: #{tpu_custom_call.1} parent=11 // pred_check
          %p165 = pneg %p79
        $region18: #{tpu_custom_call.1} parent=11 // pred_check_branch
          %167 = sbr.rel (%p165) target = $region20
        $region19: #{tpu_custom_call.1} parent=11 // pred_region
          _
        $region20: #{tpu_custom_call.1} parent=11 // pred_fallthru
          _
        // Predicated region
        $region21: #{tpu_custom_call.1} parent=11 // pred_check
          %p168 = pneg %p100
        $region22: #{tpu_custom_call.1} parent=11 // pred_check_branch
          %170 = sbr.rel (%p168) target = $region24
        $region23: #{tpu_custom_call.1} parent=11 // pred_region
          _
        $region24: #{tpu_custom_call.1} parent=11 // pred_fallthru
          _
        // Predicated region
        $region25: #{tpu_custom_call.1} parent=11 // pred_check
          %p171 = pneg %p121
        $region26: #{tpu_custom_call.1} parent=11 // pred_check_branch
          %173 = sbr.rel (%p171) target = $region28
        $region27: #{tpu_custom_call.1} parent=11 // pred_region
          _
        $region28: #{tpu_custom_call.1} parent=11 // pred_fallthru
          _
      $region12: #{tpu_custom_call.1} parent=5 // pred_fallthru
        _
      %p174 = scmp.lt.s32.totalorder %s11, 2
      // Predicated region
      $region29: #{tpu_custom_call.1} parent=5 // pred_check
        %p175 = pneg %p174
      $region30: #{tpu_custom_call.1} parent=5 // pred_check_branch
        %177 = sbr.rel (%p175) target = $region32
      $region31: #{tpu_custom_call.1} parent=5 // pred_region
        // Predicated region
        $region33: #{tpu_custom_call.1} parent=31 // pred_check
          %p178 = pneg %p31
        $region34: #{tpu_custom_call.1} parent=31 // pred_check_branch
          %180 = sbr.rel (%p178) target = $region36
        $region35: #{tpu_custom_call.1} parent=31 // pred_region
          %s181 = smul.u32 16, %s11
          %s182 = ssub.s32 25, %s181
          %p183 = scmp.lt.s32.totalorder %s182, 16
          %s184 = scalar_select %p183, %s182, 16
          %s185 = smul.u32 128, %s184
          %p186 = scmp.lt.s32.totalorder %s181, 24
          %s187 = scalar_select %p186, %s181, 24
          %s188 = smul.addr %s187, 8
          %s189 = scalar_lea.vmem %s0, %s188
          %s190 = smul.u32 16, %s11
          %s191 = ssub.s32 25, %s190
          %p192 = scmp.lt.s32.totalorder %s191, 16
          %s193 = scalar_select %p192, %s191, 16
          %s194 = smul.u32 128, %s193
        $region36: #{tpu_custom_call.1} parent=31 // pred_fallthru
          _
      $region32: #{tpu_custom_call.1} parent=5 // pred_fallthru
        _
      %p195 = scmp.le.s32.totalorder 1, %s11
      %p196 = scmp.lt.s32.totalorder %s11, 3
      %p197 = pnand %p195, %p196
      %p198 = pneg %p197
      // Predicated region
      $region37: #{tpu_custom_call.1} parent=5 // pred_check
        _
      $region38: #{tpu_custom_call.1} parent=5 // pred_check_branch
        %200 = sbr.rel (%p197) target = $region40
      $region39: #{tpu_custom_call.1} parent=5 // pred_region
        %s201 = ssub.s32 %s11, 1
        %s202 = smul.u32 16, %s16
        %s203 = ssub.s32 25, %s202
        %p204 = scmp.lt.s32.totalorder %s203, 16
        %s205 = scalar_select %p204, %s203, 16
        %s206 = smul.u32 128, %s205
        %p207 = scmp.lt.s32.totalorder %s202, 24
        %s208 = scalar_select %p207, %s202, 24
        %s209 = smul.addr %s208, 8
        %s210 = scalar_lea.vmem %s0, %s209
        %p211 = pneg %p37
        %p212 = pneg %p34
        %p213 = pneg %p58
        %p214 = pneg %p55
        %p215 = pneg %p79
        %p216 = pneg %p76
        %p217 = pneg %p100
        %p218 = pneg %p97
        %p219 = pneg %p121
        %p220 = pneg %p118
        %p221 = pneg %p147
        %p222 = pneg %p144
        %s223 = sand.u32 %s134, 1
        %s224 = sand.u32 %s134, 1
        %s225 = smul.addr %s224, 128
        %s226 = scalar_lea.vmem [#allocation2], %s225
        %s227 = smul.u32 16, %s16
        %s228 = ssub.s32 25, %s227
        %p229 = scmp.lt.s32.totalorder %s228, 16
        %s230 = scalar_select %p229, %s228, 16
        %s231 = smul.u32 128, %s230
        %p232 = scmp.lt.s32.totalorder %s227, 24
        %s233 = scalar_select %p232, %s227, 24
        %s234 = smul.addr %s233, 8
        %s235 = scalar_lea.vmem %s0, %s234
        %s236 = smul.u32 16, %s16
        %s237 = ssub.s32 25, %s236
        %p238 = scmp.lt.s32.totalorder %s237, 16
        %s239 = scalar_select %p238, %s237, 16
        %s240 = smul.u32 128, %s239
        %s241 = smul.u32 16, %s16
        %s242 = ssub.s32 25, %s241
        %p243 = scmp.lt.s32.totalorder %s242, 16
        %s244 = scalar_select %p243, %s242, 16
        %s245 = smul.u32 128, %s244
        %v246 = vld [vmem:[%s235] sm:$0xff]
        %v247 = vld [vmem:[%s235 + $0x8] sm:$0xff]
        %v248 = vld [vmem:[%s235 + $0x10] sm:$0xff]
        %v249 = vld [vmem:[%s235 + $0x18] sm:$0xff]
        %v250 = vld [vmem:[%s235 + $0x20] sm:$0xff]
        %v251 = vld [vmem:[%s235 + $0x28] sm:$0xff]
        %v252 = vld [vmem:[%s235 + $0x30] sm:$0xff]
        %v253 = vld [vmem:[%s235 + $0x38] sm:$0xff]
        %v254 = vld [vmem:[%s235 + $0x40] sm:$0xff]
        %v255 = vld [vmem:[%s235 + $0x48] sm:$0xff]
        %v256 = vld [vmem:[%s235 + $0x50] sm:$0xff]
        %v257 = vld [vmem:[%s235 + $0x58] sm:$0xff]
        %v258 = vld [vmem:[%s235 + $0x60] sm:$0xff]
        %v259 = vld [vmem:[%s235 + $0x68] sm:$0xff]
        %v260 = vld [vmem:[%s235 + $0x70] sm:$0xff]
        %v261 = vld [vmem:[%s235 + $0x78] sm:$0xff]
        %v262 = vld [vmem:[%s1] sm:$0xff]
        %v263 = vld [vmem:[%s1 + $0x8] sm:$0xff]
        %v264 = vld [vmem:[%s1 + $0x10] sm:$0xff]
        %v265 = vld [vmem:[%s1 + $0x18] sm:$0xff]
        %v266 = vld [vmem:[%s2] sm:$0x1]
        %v268 = vlaneseq
        %v269 = vshrl.u32 %v268, 7
        %v270 = vsub.s32 0, %v269
        %v271 = vrot.slane %v266, %v270
        %vm273 = vcmask 261120
        %v275 = vsel %vm273, %v246, 0
        %v278 = vsel %vm273, %v247, 0
        %v281 = vsel %vm273, %v248, 0
        %v284 = vsel %vm273, %v249, 0
        %v287 = vsel %vm273, %v250, 0
        %v290 = vsel %vm273, %v251, 0
        %v293 = vsel %vm273, %v252, 0
        %v296 = vsel %vm273, %v253, 0
        %v299 = vsel %vm273, %v254, 0
        %v302 = vsel %vm273, %v255, 0
        %v305 = vsel %vm273, %v256, 0
        %v308 = vsel %vm273, %v257, 0
        %v311 = vsel %vm273, %v258, 0
        %v314 = vsel %vm273, %v259, 0
        %v317 = vsel %vm273, %v260, 0
        %v320 = vsel %vm273, %v261, 0
        %322 = vmatprep.subr.mxu0 0.0
        %323 = vmatpush1.msra.mxu0 %v262
        %324 = vmatprep.subr.mxu0 0.0
        %325 = vmatpush1.msra.mxu0 %v263
        %326 = vmatprep.subr.mxu0 0.0
        %327 = vmatpush1.msra.mxu0 %v264
        %328 = vmatprep.subr.mxu0 0.0
        %329 = vmatpush1.msra.mxu0 %v265
        %330 = vmatprep.subr.mxu0 0.0
        %331 = vmatpush1.msra.mxu0 0.0
        %332 = vmatprep.subr.mxu0 0.0
        %333 = vmatpush1.msra.mxu0 0.0
        %334 = vmatprep.subr.mxu0 0.0
        %335 = vmatpush1.msra.mxu0 0.0
        %336 = vmatprep.subr.mxu0 0.0
        %337 = vmatpush1.msra.mxu0 0.0
        %338 = vmatprep.subr.mxu0 0.0
        %339 = vmatpush1.msra.mxu0 0.0
        %340 = vmatprep.subr.mxu0 0.0
        %341 = vmatpush1.msra.mxu0 0.0
        %342 = vmatprep.subr.mxu0 0.0
        %343 = vmatpush1.msra.mxu0 0.0
        %344 = vmatprep.subr.mxu0 0.0
        %345 = vmatpush1.msra.mxu0 0.0
        %346 = vmatprep.subr.mxu0 0.0
        %347 = vmatpush1.msra.mxu0 0.0
        %348 = vmatprep.subr.mxu0 0.0
        %349 = vmatpush1.msra.mxu0 0.0
        %350 = vmatprep.subr.mxu0 0.0
        %351 = vmatpush1.msra.mxu0 0.0
        %352 = vmatprep.subr.mxu0 0.0
        %353 = vmatpush1.msra.mxu0 0.0
        %354 = vmatprep.subr.mxu0 0.0
        %355 = vmatpush1.msra.mxu0 0.0
        %356 = vmatprep.subr.mxu0 0.0
        %357 = vmatpush1.msra.mxu0 0.0
        %358 = vmatprep.subr.mxu0 0.0
        %359 = vmatpush1.msra.mxu0 0.0
        %360 = vmatprep.subr.mxu0 0.0
        %361 = vmatpush1.msra.mxu0 0.0
        %362 = vmatprep.subr.mxu0 0.0
        %363 = vmatpush1.msra.mxu0 0.0
        %364 = vmatprep.subr.mxu0 0.0
        %365 = vmatpush1.msra.mxu0 0.0
        %366 = vmatprep.subr.mxu0 0.0
        %367 = vmatpush1.msra.mxu0 0.0
        %368 = vmatprep.subr.mxu0 0.0
        %369 = vmatpush1.msra.mxu0 0.0
        %370 = vmatprep.subr.mxu0 0.0
        %371 = vmatpush1.msra.mxu0 0.0
        %372 = vmatprep.subr.mxu0 0.0
        %373 = vmatpush1.msra.mxu0 0.0
        %374 = vmatprep.subr.mxu0 0.0
        %375 = vmatpush1.msra.mxu0 0.0
        %376 = vmatprep.subr.mxu0 0.0
        %377 = vmatpush1.msra.mxu0 0.0
        %378 = vmatprep.subr.mxu0 0.0
        %379 = vmatpush1.msra.mxu0 0.0
        %380 = vmatprep.subr.mxu0 0.0
        %381 = vmatpush1.msra.mxu0 0.0
        %382 = vmatprep.subr.mxu0 0.0
        %383 = vmatpush1.msra.mxu0 0.0
        %384 = vmatprep.subr.mxu0 0.0
        %385 = vmatpush1.msra.mxu0 0.0
        %386 = vmatprep.mubr.f32.mxu0 0.0
        %387 = vmatmul.mubr.f32.gmra.mrb[0].mxu0 %v275
        %v388 = vpop.f32.mrb[0].mxu0
        %v389 = vadd.f32 %v271, %v388
        %v390 = vpop.f32.mrb[0].mxu0
        %391 = vmatprep.mubr.f32.mxu0 0.0
        %392 = vmatmul.mubr.f32.gmra.mrb[0].mxu0 %v278
        %v393 = vpop.f32.mrb[0].mxu0
        %v394 = vadd.f32 %v271, %v393
        %v395 = vpop.f32.mrb[0].mxu0
        %396 = vmatprep.mubr.f32.mxu0 0.0
        %397 = vmatmul.mubr.f32.gmra.mrb[0].mxu0 %v281
        %v398 = vpop.f32.mrb[0].mxu0
        %v399 = vadd.f32 %v271, %v398
        %v400 = vpop.f32.mrb[0].mxu0
        %401 = vmatprep.mubr.f32.mxu0 0.0
        %402 = vmatmul.mubr.f32.gmra.mrb[0].mxu0 %v284
        %v403 = vpop.f32.mrb[0].mxu0
        %v404 = vadd.f32 %v271, %v403
        %v405 = vpop.f32.mrb[0].mxu0
        %406 = vmatprep.mubr.f32.mxu0 0.0
        %407 = vmatmul.mubr.f32.gmra.mrb[0].mxu0 %v287
        %v408 = vpop.f32.mrb[0].mxu0
        %v409 = vadd.f32 %v271, %v408
        %v410 = vpop.f32.mrb[0].mxu0
        %411 = vmatprep.mubr.f32.mxu0 0.0
        %412 = vmatmul.mubr.f32.gmra.mrb[0].mxu0 %v290
        %v413 = vpop.f32.mrb[0].mxu0
        %v414 = vadd.f32 %v271, %v413
        %v415 = vpop.f32.mrb[0].mxu0
        %416 = vmatprep.mubr.f32.mxu0 0.0
        %417 = vmatmul.mubr.f32.gmra.mrb[0].mxu0 %v293
        %v418 = vpop.f32.mrb[0].mxu0
        %v419 = vadd.f32 %v271, %v418
        %v420 = vpop.f32.mrb[0].mxu0
        %421 = vmatprep.mubr.f32.mxu0 0.0
        %422 = vmatmul.mubr.f32.gmra.mrb[0].mxu0 %v296
        %v423 = vpop.f32.mrb[0].mxu0
        %v424 = vadd.f32 %v271, %v423
        %v425 = vpop.f32.mrb[0].mxu0
        %426 = vmatprep.mubr.f32.mxu0 0.0
        %427 = vmatmul.mubr.f32.gmra.mrb[0].mxu0 %v299
        %v428 = vpop.f32.mrb[0].mxu0
        %v429 = vadd.f32 %v271, %v428
        %v430 = vpop.f32.mrb[0].mxu0
        %431 = vmatprep.mubr.f32.mxu0 0.0
        %432 = vmatmul.mubr.f32.gmra.mrb[0].mxu0 %v302
        %v433 = vpop.f32.mrb[0].mxu0
        %v434 = vadd.f32 %v271, %v433
        %v435 = vpop.f32.mrb[0].mxu0
        %436 = vmatprep.mubr.f32.mxu0 0.0
        %437 = vmatmul.mubr.f32.gmra.mrb[0].mxu0 %v305
        %v438 = vpop.f32.mrb[0].mxu0
        %v439 = vadd.f32 %v271, %v438
        %v440 = vpop.f32.mrb[0].mxu0
        %441 = vmatprep.mubr.f32.mxu0 0.0
        %442 = vmatmul.mubr.f32.gmra.mrb[0].mxu0 %v308
        %v443 = vpop.f32.mrb[0].mxu0
        %v444 = vadd.f32 %v271, %v443
        %v445 = vpop.f32.mrb[0].mxu0
        %446 = vmatprep.mubr.f32.mxu0 0.0
        %447 = vmatmul.mubr.f32.gmra.mrb[0].mxu0 %v311
        %v448 = vpop.f32.mrb[0].mxu0
        %v449 = vadd.f32 %v271, %v448
        %v450 = vpop.f32.mrb[0].mxu0
        %451 = vmatprep.mubr.f32.mxu0 0.0
        %452 = vmatmul.mubr.f32.gmra.mrb[0].mxu0 %v314
        %v453 = vpop.f32.mrb[0].mxu0
        %v454 = vadd.f32 %v271, %v453
        %v455 = vpop.f32.mrb[0].mxu0
        %456 = vmatprep.mubr.f32.mxu0 0.0
        %457 = vmatmul.mubr.f32.gmra.mrb[0].mxu0 %v317
        %v458 = vpop.f32.mrb[0].mxu0
        %v459 = vadd.f32 %v271, %v458
        %v460 = vpop.f32.mrb[0].mxu0
        %461 = vmatprep.mubr.f32.mxu0 0.0
        %462 = vmatmul.mubr.f32.gmra.mrb[0].mxu0 %v320
        %v463 = vpop.f32.mrb[0].mxu0
        %v464 = vadd.f32 %v271, %v463
        %v465 = vpop.f32.mrb[0].mxu0
        %466 = vdwg.mxu0
        %v467 = vmax.f32 %v389, 0.0
        %v468 = vmax.f32 %v394, 0.0
        %v469 = vmax.f32 %v399, 0.0
        %v470 = vmax.f32 %v404, 0.0
        %v471 = vmax.f32 %v409, 0.0
        %v472 = vmax.f32 %v414, 0.0
        %v473 = vmax.f32 %v419, 0.0
        %v474 = vmax.f32 %v424, 0.0
        %v475 = vmax.f32 %v429, 0.0
        %v476 = vmax.f32 %v434, 0.0
        %v477 = vmax.f32 %v439, 0.0
        %v478 = vmax.f32 %v444, 0.0
        %v479 = vmax.f32 %v449, 0.0
        %v480 = vmax.f32 %v454, 0.0
        %v481 = vmax.f32 %v459, 0.0
        %v482 = vmax.f32 %v464, 0.0
        %v483 = vld [vmem:[%s3] sm:$0xff]
        %v484 = vld [vmem:[%s3 + $0x8] sm:$0xff]
        %v485 = vld [vmem:[%s3 + $0x10] sm:$0xff]
        %v486 = vld [vmem:[%s3 + $0x18] sm:$0xff]
        %v487 = vld [vmem:[%s3 + $0x20] sm:$0xff]
        %v488 = vld [vmem:[%s3 + $0x28] sm:$0xff]
        %v489 = vld [vmem:[%s3 + $0x30] sm:$0xff]
        %v490 = vld [vmem:[%s3 + $0x38] sm:$0xff]
        %v491 = vld [vmem:[%s4] sm:$0x1]
        %v493 = vlaneseq
        %v494 = vshrl.u32 %v493, 7
        %v495 = vsub.s32 0, %v494
        %v496 = vrot.slane %v491, %v495
        %vm498 = vcmask 523264
        %v500 = vsel %vm498, %v467, 0
        %v503 = vsel %vm498, %v468, 0
        %v506 = vsel %vm498, %v469, 0
        %v509 = vsel %vm498, %v470, 0
        %v512 = vsel %vm498, %v471, 0
        %v515 = vsel %vm498, %v472, 0
        %v518 = vsel %vm498, %v473, 0
        %v521 = vsel %vm498, %v474, 0
        %v524 = vsel %vm498, %v475, 0
        %v527 = vsel %vm498, %v476, 0
        %v530 = vsel %vm498, %v477, 0
        %v533 = vsel %vm498, %v478, 0
        %v536 = vsel %vm498, %v479, 0
        %v539 = vsel %vm498, %v480, 0
        %v542 = vsel %vm498, %v481, 0
        %v545 = vsel %vm498, %v482, 0
        %547 = vmatprep.subr.mxu0 0.0
        %548 = vmatpush1.msra.mxu0 %v483
        %549 = vmatprep.subr.mxu0 0.0
        %550 = vmatpush1.msra.mxu0 %v484
        %551 = vmatprep.subr.mxu0 0.0
        %552 = vmatpush1.msra.mxu0 %v485
        %553 = vmatprep.subr.mxu0 0.0
        %554 = vmatpush1.msra.mxu0 %v486
        %555 = vmatprep.subr.mxu0 0.0
        %556 = vmatpush1.msra.mxu0 %v487
        %557 = vmatprep.subr.mxu0 0.0
        %558 = vmatpush1.msra.mxu0 %v488
        %559 = vmatprep.subr.mxu0 0.0
        %560 = vmatpush1.msra.mxu0 %v489
        %561 = vmatprep.subr.mxu0 0.0
        %562 = vmatpush1.msra.mxu0 %v490
        %563 = vmatprep.subr.mxu0 0.0
        %564 = vmatpush1.msra.mxu0 0.0
        %565 = vmatprep.subr.mxu0 0.0
        %566 = vmatpush1.msra.mxu0 0.0
        %567 = vmatprep.subr.mxu0 0.0
        %568 = vmatpush1.msra.mxu0 0.0
        %569 = vmatprep.subr.mxu0 0.0
        %570 = vmatpush1.msra.mxu0 0.0
        %571 = vmatprep.subr.mxu0 0.0
        %572 = vmatpush1.msra.mxu0 0.0
        %573 = vmatprep.subr.mxu0 0.0
        %574 = vmatpush1.msra.mxu0 0.0
        %575 = vmatprep.subr.mxu0 0.0
        %576 = vmatpush1.msra.mxu0 0.0
        %577 = vmatprep.subr.mxu0 0.0
        %578 = vmatpush1.msra.mxu0 0.0
        %579 = vmatprep.subr.mxu0 0.0
        %580 = vmatpush1.msra.mxu0 0.0
        %581 = vmatprep.subr.mxu0 0.0
        %582 = vmatpush1.msra.mxu0 0.0
        %583 = vmatprep.subr.mxu0 0.0
        %584 = vmatpush1.msra.mxu0 0.0
        %585 = vmatprep.subr.mxu0 0.0
        %586 = vmatpush1.msra.mxu0 0.0
        %587 = vmatprep.subr.mxu0 0.0
        %588 = vmatpush1.msra.mxu0 0.0
        %589 = vmatprep.subr.mxu0 0.0
        %590 = vmatpush1.msra.mxu0 0.0
        %591 = vmatprep.subr.mxu0 0.0
        %592 = vmatpush1.msra.mxu0 0.0
        %593 = vmatprep.subr.mxu0 0.0
        %594 = vmatpush1.msra.mxu0 0.0
        %595 = vmatprep.subr.mxu0 0.0
        %596 = vmatpush1.msra.mxu0 0.0
        %597 = vmatprep.subr.mxu0 0.0
        %598 = vmatpush1.msra.mxu0 0.0
        %599 = vmatprep.subr.mxu0 0.0
        %600 = vmatpush1.msra.mxu0 0.0
        %601 = vmatprep.subr.mxu0 0.0
        %602 = vmatpush1.msra.mxu0 0.0
        %603 = vmatprep.subr.mxu0 0.0
        %604 = vmatpush1.msra.mxu0 0.0
        %605 = vmatprep.subr.mxu0 0.0
        %606 = vmatpush1.msra.mxu0 0.0
        %607 = vmatprep.subr.mxu0 0.0
        %608 = vmatpush1.msra.mxu0 0.0
        %609 = vmatprep.subr.mxu0 0.0
        %610 = vmatpush1.msra.mxu0 0.0
        %611 = vmatprep.mubr.f32.mxu0 0.0
        %612 = vmatmul.mubr.f32.gmra.mrb[0].mxu0 %v500
        %v613 = vpop.f32.mrb[0].mxu0
        %v614 = vadd.f32 %v496, %v613
        %v615 = vpop.f32.mrb[0].mxu0
        %616 = vmatprep.mubr.f32.mxu0 0.0
        %617 = vmatmul.mubr.f32.gmra.mrb[0].mxu0 %v503
        %v618 = vpop.f32.mrb[0].mxu0
        %v619 = vadd.f32 %v496, %v618
        %v620 = vpop.f32.mrb[0].mxu0
        %621 = vmatprep.mubr.f32.mxu0 0.0
        %622 = vmatmul.mubr.f32.gmra.mrb[0].mxu0 %v506
        %v623 = vpop.f32.mrb[0].mxu0
        %v624 = vadd.f32 %v496, %v623
        %v625 = vpop.f32.mrb[0].mxu0
        %626 = vmatprep.mubr.f32.mxu0 0.0
        %627 = vmatmul.mubr.f32.gmra.mrb[0].mxu0 %v509
        %v628 = vpop.f32.mrb[0].mxu0
        %v629 = vadd.f32 %v496, %v628
        %v630 = vpop.f32.mrb[0].mxu0
        %631 = vmatprep.mubr.f32.mxu0 0.0
        %632 = vmatmul.mubr.f32.gmra.mrb[0].mxu0 %v512
        %v633 = vpop.f32.mrb[0].mxu0
        %v634 = vadd.f32 %v496, %v633
        %v635 = vpop.f32.mrb[0].mxu0
        %636 = vmatprep.mubr.f32.mxu0 0.0
        %637 = vmatmul.mubr.f32.gmra.mrb[0].mxu0 %v515
        %v638 = vpop.f32.mrb[0].mxu0
        %v639 = vadd.f32 %v496, %v638
        %v640 = vpop.f32.mrb[0].mxu0
        %641 = vmatprep.mubr.f32.mxu0 0.0
        %642 = vmatmul.mubr.f32.gmra.mrb[0].mxu0 %v518
        %v643 = vpop.f32.mrb[0].mxu0
        %v644 = vadd.f32 %v496, %v643
        %v645 = vpop.f32.mrb[0].mxu0
        %646 = vmatprep.mubr.f32.mxu0 0.0
        %647 = vmatmul.mubr.f32.gmra.mrb[0].mxu0 %v521
        %v648 = vpop.f32.mrb[0].mxu0
        %v649 = vadd.f32 %v496, %v648
        %v650 = vpop.f32.mrb[0].mxu0
        %651 = vmatprep.mubr.f32.mxu0 0.0
        %652 = vmatmul.mubr.f32.gmra.mrb[0].mxu0 %v524
        %v653 = vpop.f32.mrb[0].mxu0
        %v654 = vadd.f32 %v496, %v653
        %v655 = vpop.f32.mrb[0].mxu0
        %656 = vmatprep.mubr.f32.mxu0 0.0
        %657 = vmatmul.mubr.f32.gmra.mrb[0].mxu0 %v527
        %v658 = vpop.f32.mrb[0].mxu0
        %v659 = vadd.f32 %v496, %v658
        %v660 = vpop.f32.mrb[0].mxu0
        %661 = vmatprep.mubr.f32.mxu0 0.0
        %662 = vmatmul.mubr.f32.gmra.mrb[0].mxu0 %v530
        %v663 = vpop.f32.mrb[0].mxu0
        %v664 = vadd.f32 %v496, %v663
        %v665 = vpop.f32.mrb[0].mxu0
        %666 = vmatprep.mubr.f32.mxu0 0.0
        %667 = vmatmul.mubr.f32.gmra.mrb[0].mxu0 %v533
        %v668 = vpop.f32.mrb[0].mxu0
        %v669 = vadd.f32 %v496, %v668
        %v670 = vpop.f32.mrb[0].mxu0
        %671 = vmatprep.mubr.f32.mxu0 0.0
        %672 = vmatmul.mubr.f32.gmra.mrb[0].mxu0 %v536
        %v673 = vpop.f32.mrb[0].mxu0
        %v674 = vadd.f32 %v496, %v673
        %v675 = vpop.f32.mrb[0].mxu0
        %676 = vmatprep.mubr.f32.mxu0 0.0
        %677 = vmatmul.mubr.f32.gmra.mrb[0].mxu0 %v539
        %v678 = vpop.f32.mrb[0].mxu0
        %v679 = vadd.f32 %v496, %v678
        %v680 = vpop.f32.mrb[0].mxu0
        %681 = vmatprep.mubr.f32.mxu0 0.0
        %682 = vmatmul.mubr.f32.gmra.mrb[0].mxu0 %v542
        %v683 = vpop.f32.mrb[0].mxu0
        %v684 = vadd.f32 %v496, %v683
        %v685 = vpop.f32.mrb[0].mxu0
        %686 = vmatprep.mubr.f32.mxu0 0.0
        %687 = vmatmul.mubr.f32.gmra.mrb[0].mxu0 %v545
        %v688 = vpop.f32.mrb[0].mxu0
        %v689 = vadd.f32 %v496, %v688
        %v690 = vpop.f32.mrb[0].mxu0
        %691 = vdwg.mxu0
        %v692 = vmax.f32 %v614, 0.0
        %v693 = vmax.f32 %v619, 0.0
        %v694 = vmax.f32 %v624, 0.0
        %v695 = vmax.f32 %v629, 0.0
        %v696 = vmax.f32 %v634, 0.0
        %v697 = vmax.f32 %v639, 0.0
        %v698 = vmax.f32 %v644, 0.0
        %v699 = vmax.f32 %v649, 0.0
        %v700 = vmax.f32 %v654, 0.0
        %v701 = vmax.f32 %v659, 0.0
        %v702 = vmax.f32 %v664, 0.0
        %v703 = vmax.f32 %v669, 0.0
        %v704 = vmax.f32 %v674, 0.0
        %v705 = vmax.f32 %v679, 0.0
        %v706 = vmax.f32 %v684, 0.0
        %v707 = vmax.f32 %v689, 0.0
        %vm708 = vcmask 64512
        %709 = vst.msk [vmem:[%s226] sm:$0xff] %vm708, %v692
        %710 = vst.msk [vmem:[%s226 + $0x8] sm:$0xff] %vm708, %v693
        %711 = vst.msk [vmem:[%s226 + $0x10] sm:$0xff] %vm708, %v694
        %712 = vst.msk [vmem:[%s226 + $0x18] sm:$0xff] %vm708, %v695
        %713 = vst.msk [vmem:[%s226 + $0x20] sm:$0xff] %vm708, %v696
        %714 = vst.msk [vmem:[%s226 + $0x28] sm:$0xff] %vm708, %v697
        %715 = vst.msk [vmem:[%s226 + $0x30] sm:$0xff] %vm708, %v698
        %716 = vst.msk [vmem:[%s226 + $0x38] sm:$0xff] %vm708, %v699
        %717 = vst.msk [vmem:[%s226 + $0x40] sm:$0xff] %vm708, %v700
        %718 = vst.msk [vmem:[%s226 + $0x48] sm:$0xff] %vm708, %v701
        %719 = vst.msk [vmem:[%s226 + $0x50] sm:$0xff] %vm708, %v702
        %720 = vst.msk [vmem:[%s226 + $0x58] sm:$0xff] %vm708, %v703
        %721 = vst.msk [vmem:[%s226 + $0x60] sm:$0xff] %vm708, %v704
        %722 = vst.msk [vmem:[%s226 + $0x68] sm:$0xff] %vm708, %v705
        %723 = vst.msk [vmem:[%s226 + $0x70] sm:$0xff] %vm708, %v706
        %724 = vst.msk [vmem:[%s226 + $0x78] sm:$0xff] %vm708, %v707
        %s725 = sand.u32 %s134, 1
        %s726 = sand.u32 %s134, 1
        %s727 = smul.addr %s726, 128
        %s728 = scalar_lea.vmem [#allocation2], %s727
        // Predicated region
        $region41: #{tpu_custom_call.1} parent=39 // pred_check
          %p729 = pneg %p144
        $region42: #{tpu_custom_call.1} parent=39 // pred_check_branch
          %731 = sbr.rel (%p729) target = $region44
        $region43: #{tpu_custom_call.1} parent=39 // pred_region
          %s732 = smul.u32 16, %s16
          %s733 = ssub.s32 25, %s732
          %p734 = scmp.lt.s32.totalorder %s733, 16
          %s735 = scalar_select %p734, %s733, 16
          %s736 = smul.u32 128, %s735
          %p737 = scmp.ne.s32.totalorder 0, %s736
          %s738 = smul.addr %s732, 8
          %s739 = scalar_lea.vmem %s5, %s738
          // Predicated region
          $region45: #{tpu_custom_call.1} parent=43 // pred_check
            %p740 = pneg %p737
          $region46: #{tpu_custom_call.1} parent=43 // pred_check_branch
            %742 = sbr.rel (%p740) target = $region48
          $region47: #{tpu_custom_call.1} parent=43 // pred_region
            // Predicated region
            $region49: #{tpu_custom_call.1} parent=47 // pred_check
              _
            $region50: #{tpu_custom_call.1} parent=47 // pred_check_branch
              %744 = sbr.rel (0) target = $region52
            $region51: #{tpu_custom_call.1} parent=47 // pred_region
              // Predicated region
              $region71: #{tpu_custom_call.1} parent=51 // pred_check
                _
              $region72: #{tpu_custom_call.1} parent=51 // pred_check_branch
                %823 = sbr.rel (0) target = $region74
              $region73: #{tpu_custom_call.1} parent=51 // pred_region
                %s824 = sshrl.u32 %s735, 4
                // While loop
                $region75: #{tpu_custom_call.1} parent=73 // loop_pre_header
                  _
                $region76: #{tpu_custom_call.1} parent=73 // loop_header
                  %s826 = sphi 0, %s828
                  %p827 = scmp.ge.s32.totalorder %s826, %s824
                  %s831 = sphi 0, %s868
                  %s832 = sphi %s728, %s871
                  %s833 = sphi %s739, %s872
                $region77: #{tpu_custom_call.1} parent=73 // loop_header_branch
                  %830 = sbr.rel (%p827) target = $region81
                $region78: #{tpu_custom_call.1} parent=73 // loop_body
                  %v834 = vld [vmem:[%s832] sm:$0xff]
                  %835 = vst [vmem:[%s833] sm:$0xff] %v834
                  %v836 = vld [vmem:[%s832 + $0x8] sm:$0xff]
                  %837 = vst [vmem:[%s833 + $0x8] sm:$0xff] %v836
                  %v838 = vld [vmem:[%s832 + $0x10] sm:$0xff]
                  %839 = vst [vmem:[%s833 + $0x10] sm:$0xff] %v838
                  %v840 = vld [vmem:[%s832 + $0x18] sm:$0xff]
                  %841 = vst [vmem:[%s833 + $0x18] sm:$0xff] %v840
                  %v842 = vld [vmem:[%s832 + $0x20] sm:$0xff]
                  %843 = vst [vmem:[%s833 + $0x20] sm:$0xff] %v842
                  %v844 = vld [vmem:[%s832 + $0x28] sm:$0xff]
                  %845 = vst [vmem:[%s833 + $0x28] sm:$0xff] %v844
                  %v846 = vld [vmem:[%s832 + $0x30] sm:$0xff]
                  %847 = vst [vmem:[%s833 + $0x30] sm:$0xff] %v846
                  %v848 = vld [vmem:[%s832 + $0x38] sm:$0xff]
                  %849 = vst [vmem:[%s833 + $0x38] sm:$0xff] %v848
                  %v850 = vld [vmem:[%s832 + $0x40] sm:$0xff]
                  %851 = vst [vmem:[%s833 + $0x40] sm:$0xff] %v850
                  %v852 = vld [vmem:[%s832 + $0x48] sm:$0xff]
                  %853 = vst [vmem:[%s833 + $0x48] sm:$0xff] %v852
                  %v854 = vld [vmem:[%s832 + $0x50] sm:$0xff]
                  %855 = vst [vmem:[%s833 + $0x50] sm:$0xff] %v854
                  %v856 = vld [vmem:[%s832 + $0x58] sm:$0xff]
                  %857 = vst [vmem:[%s833 + $0x58] sm:$0xff] %v856
                  %v858 = vld [vmem:[%s832 + $0x60] sm:$0xff]
                  %859 = vst [vmem:[%s833 + $0x60] sm:$0xff] %v858
                  %v860 = vld [vmem:[%s832 + $0x68] sm:$0xff]
                  %861 = vst [vmem:[%s833 + $0x68] sm:$0xff] %v860
                  %v862 = vld [vmem:[%s832 + $0x70] sm:$0xff]
                  %863 = vst [vmem:[%s833 + $0x70] sm:$0xff] %v862
                  %v864 = vld [vmem:[%s832 + $0x78] sm:$0xff]
                  %865 = vst [vmem:[%s833 + $0x78] sm:$0xff] %v864
                  %s866 = sadd.s32 1, %s831
                  %p867 = scmp.ge.s32.totalorder %s866, %s824
                  %s868 = scalar_select %p867, 0, %s866
                  %s869 = smul.u32 %s868, 128
                  %s870 = smul.u32 %s868, 128
                  %s871 = scalar_lea.vmem %s728, %s869 [#allocation2]
                  %s872 = scalar_lea.vmem %s739, %s870
                $region79: #{tpu_custom_call.1} parent=73 // loop_footer
                  %s828 = sadd.s32 %s826, 1
                $region80: #{tpu_custom_call.1} parent=73 // loop_footer_branch
                  %825 = sbr.rel target = $region76
                $region81: #{tpu_custom_call.1} parent=73 // loop_exit
                  _
                %s873 = sshrl.u32 %s735, 4
                %s874 = sand.u32 %s735, 15
                %s875 = smul.u32 %s873, 16
                %s876 = smul.u32 8, %s875
                %s877 = scalar_lea.vmem %s728, %s876 [#allocation2]
                %s878 = smul.u32 8, %s875
                %s879 = scalar_lea.vmem %s739, %s878
                // While loop
                $region82: #{tpu_custom_call.1} parent=73 // loop_pre_header
                  _
                $region83: #{tpu_custom_call.1} parent=73 // loop_header
                  %s881 = sphi 0, %s883
                  %p882 = scmp.ge.s32.totalorder %s881, %s874
                  %s886 = sphi 0, %s893
                  %s887 = sphi %s877, %s896
                  %s888 = sphi %s879, %s897
                $region84: #{tpu_custom_call.1} parent=73 // loop_header_branch
                  %885 = sbr.rel (%p882) target = $region88
                $region85: #{tpu_custom_call.1} parent=73 // loop_body
                  %v889 = vld [vmem:[%s887] sm:$0xff]
                  %890 = vst [vmem:[%s888] sm:$0xff] %v889
                  %s891 = sadd.s32 1, %s886
                  %p892 = scmp.ge.s32.totalorder %s891, %s874
                  %s893 = scalar_select %p892, 0, %s891
                  %s894 = smul.u32 %s893, 8
                  %s895 = smul.u32 %s893, 8
                  %s896 = scalar_lea.vmem %s877, %s894 [#allocation2]
                  %s897 = scalar_lea.vmem %s879, %s895
                $region86: #{tpu_custom_call.1} parent=73 // loop_footer
                  %s883 = sadd.s32 %s881, 1
                $region87: #{tpu_custom_call.1} parent=73 // loop_footer_branch
                  %880 = sbr.rel target = $region83
                $region88: #{tpu_custom_call.1} parent=73 // loop_exit
                  _
              $region74: #{tpu_custom_call.1} parent=51 // pred_fallthru
                _
              // Predicated region
              $region89: #{tpu_custom_call.1} parent=51 // pred_check
                _
              $region90: #{tpu_custom_call.1} parent=51 // pred_check_branch
                %899 = sbr.rel target = $region92
              $region91: #{tpu_custom_call.1} parent=51 // pred_region
                _
              $region92: #{tpu_custom_call.1} parent=51 // pred_fallthru
                _
            $region52: #{tpu_custom_call.1} parent=47 // pred_fallthru
              _
            // Predicated region
            $region53: #{tpu_custom_call.1} parent=47 // pred_check
              _
            $region54: #{tpu_custom_call.1} parent=47 // pred_check_branch
              %746 = sbr.rel target = $region56
            $region55: #{tpu_custom_call.1} parent=47 // pred_region
              %s748 = sshrl.u32 %s735, 4
              // While loop
              $region57: #{tpu_custom_call.1} parent=55 // loop_pre_header
                _
              $region58: #{tpu_custom_call.1} parent=55 // loop_header
                %s750 = sphi 0, %s752
                %p751 = scmp.ge.s32.totalorder %s750, %s748
                %s755 = sphi 0, %s792
                %s756 = sphi %s728, %s795
                %s757 = sphi %s739, %s796
              $region59: #{tpu_custom_call.1} parent=55 // loop_header_branch
                %754 = sbr.rel (%p751) target = $region63
              $region60: #{tpu_custom_call.1} parent=55 // loop_body
                %v758 = vld [vmem:[%s756] sm:$0xff]
                %759 = vst [vmem:[%s757] sm:$0xff] %v758
                %v760 = vld [vmem:[%s756 + $0x8] sm:$0xff]
                %761 = vst [vmem:[%s757 + $0x8] sm:$0xff] %v760
                %v762 = vld [vmem:[%s756 + $0x10] sm:$0xff]
                %763 = vst [vmem:[%s757 + $0x10] sm:$0xff] %v762
                %v764 = vld [vmem:[%s756 + $0x18] sm:$0xff]
                %765 = vst [vmem:[%s757 + $0x18] sm:$0xff] %v764
                %v766 = vld [vmem:[%s756 + $0x20] sm:$0xff]
                %767 = vst [vmem:[%s757 + $0x20] sm:$0xff] %v766
                %v768 = vld [vmem:[%s756 + $0x28] sm:$0xff]
                %769 = vst [vmem:[%s757 + $0x28] sm:$0xff] %v768
                %v770 = vld [vmem:[%s756 + $0x30] sm:$0xff]
                %771 = vst [vmem:[%s757 + $0x30] sm:$0xff] %v770
                %v772 = vld [vmem:[%s756 + $0x38] sm:$0xff]
                %773 = vst [vmem:[%s757 + $0x38] sm:$0xff] %v772
                %v774 = vld [vmem:[%s756 + $0x40] sm:$0xff]
                %775 = vst [vmem:[%s757 + $0x40] sm:$0xff] %v774
                %v776 = vld [vmem:[%s756 + $0x48] sm:$0xff]
                %777 = vst [vmem:[%s757 + $0x48] sm:$0xff] %v776
                %v778 = vld [vmem:[%s756 + $0x50] sm:$0xff]
                %779 = vst [vmem:[%s757 + $0x50] sm:$0xff] %v778
                %v780 = vld [vmem:[%s756 + $0x58] sm:$0xff]
                %781 = vst [vmem:[%s757 + $0x58] sm:$0xff] %v780
                %v782 = vld [vmem:[%s756 + $0x60] sm:$0xff]
                %783 = vst [vmem:[%s757 + $0x60] sm:$0xff] %v782
                %v784 = vld [vmem:[%s756 + $0x68] sm:$0xff]
                %785 = vst [vmem:[%s757 + $0x68] sm:$0xff] %v784
                %v786 = vld [vmem:[%s756 + $0x70] sm:$0xff]
                %787 = vst [vmem:[%s757 + $0x70] sm:$0xff] %v786
                %v788 = vld [vmem:[%s756 + $0x78] sm:$0xff]
                %789 = vst [vmem:[%s757 + $0x78] sm:$0xff] %v788
                %s790 = sadd.s32 1, %s755
                %p791 = scmp.ge.s32.totalorder %s790, %s748
                %s792 = scalar_select %p791, 0, %s790
                %s793 = smul.u32 %s792, 128
                %s794 = smul.u32 %s792, 128
                %s795 = scalar_lea.vmem %s728, %s793 [#allocation2]
                %s796 = scalar_lea.vmem %s739, %s794
              $region61: #{tpu_custom_call.1} parent=55 // loop_footer
                %s752 = sadd.s32 %s750, 1
              $region62: #{tpu_custom_call.1} parent=55 // loop_footer_branch
                %749 = sbr.rel target = $region58
              $region63: #{tpu_custom_call.1} parent=55 // loop_exit
                _
              %s797 = sshrl.u32 %s735, 4
              %s798 = sand.u32 %s735, 15
              %s799 = smul.u32 %s797, 16
              %s800 = smul.u32 8, %s799
              %s801 = scalar_lea.vmem %s728, %s800 [#allocation2]
              %s802 = smul.u32 8, %s799
              %s803 = scalar_lea.vmem %s739, %s802
              // While loop
              $region64: #{tpu_custom_call.1} parent=55 // loop_pre_header
                _
              $region65: #{tpu_custom_call.1} parent=55 // loop_header
                %s805 = sphi 0, %s807
                %p806 = scmp.ge.s32.totalorder %s805, %s798
                %s810 = sphi 0, %s817
                %s811 = sphi %s801, %s820
                %s812 = sphi %s803, %s821
              $region66: #{tpu_custom_call.1} parent=55 // loop_header_branch
                %809 = sbr.rel (%p806) target = $region70
              $region67: #{tpu_custom_call.1} parent=55 // loop_body
                %v813 = vld [vmem:[%s811] sm:$0xff]
                %814 = vst [vmem:[%s812] sm:$0xff] %v813
                %s815 = sadd.s32 1, %s810
                %p816 = scmp.ge.s32.totalorder %s815, %s798
                %s817 = scalar_select %p816, 0, %s815
                %s818 = smul.u32 %s817, 8
                %s819 = smul.u32 %s817, 8
                %s820 = scalar_lea.vmem %s801, %s818 [#allocation2]
                %s821 = scalar_lea.vmem %s803, %s819
              $region68: #{tpu_custom_call.1} parent=55 // loop_footer
                %s807 = sadd.s32 %s805, 1
              $region69: #{tpu_custom_call.1} parent=55 // loop_footer_branch
                %804 = sbr.rel target = $region65
              $region70: #{tpu_custom_call.1} parent=55 // loop_exit
                _
            $region56: #{tpu_custom_call.1} parent=47 // pred_fallthru
              _
          $region48: #{tpu_custom_call.1} parent=43 // pred_fallthru
            _
          %900 = vnop
        $region44: #{tpu_custom_call.1} parent=39 // pred_fallthru
          _
      $region40: #{tpu_custom_call.1} parent=5 // pred_fallthru
        _
      %p901 = scmp.le.s32.totalorder 2, %s11
      // Predicated region
      $region93: #{tpu_custom_call.1} parent=5 // pred_check
        %p902 = pneg %p901
      $region94: #{tpu_custom_call.1} parent=5 // pred_check_branch
        %904 = sbr.rel (%p902) target = $region96
      $region95: #{tpu_custom_call.1} parent=5 // pred_region
        %s905 = ssub.s32 %s11, 2
        // Predicated region
        $region97: #{tpu_custom_call.1} parent=95 // pred_check
          %p906 = pneg %p150
        $region98: #{tpu_custom_call.1} parent=95 // pred_check_branch
          %908 = sbr.rel (%p906) target = $region100
        $region99: #{tpu_custom_call.1} parent=95 // pred_region
          %s909 = sand.u32 %s135, 1
          %s910 = sand.u32 %s135, 1
          %s911 = smul.addr %s910, 128
          %s912 = scalar_lea.vmem [#allocation2], %s911
        $region100: #{tpu_custom_call.1} parent=95 // pred_fallthru
          _
      $region96: #{tpu_custom_call.1} parent=5 // pred_fallthru
        _
    $region6: #{tpu_custom_call.1} parent=1 // loop_footer
      %s15 = sadd.s32 1, %s11
    $region7: #{tpu_custom_call.1} parent=1 // loop_footer_branch
      %10 = sbr.rel target = $region3
    $region8: #{tpu_custom_call.1} parent=1 // loop_exit
      _

</llo_original>
